<compile_context>
chip_gen: v7x
topology: tpu7x:2x2x1
jax: 0.10.0
libtpu: 0.0.40
codegen_flags: <defaults>
</compile_context>

<pallas_src>
import jax
import jax.numpy as jnp
from jax import lax
from jax.experimental import pallas as pl
from jax.experimental.pallas import tpu as pltpu


def _make_nll_partial_kernel(n, tn):
    """Kernel: per-tile sum of negative log-likelihoods, broadcast into a lane-dense block."""

    def kernel(logits_ref, labels_ref, psum_ref):
        x = logits_ref[...]                                    # (tn, C), native dtype
        labels = labels_ref[...]                               # (tn, 1) int32

        # Row max and one-hot select are exact in the native dtype (bf16 or f32).
        m = jnp.max(x, axis=-1, keepdims=True)                 # (tn, 1)
        col = lax.broadcasted_iota(jnp.int32, x.shape, 1)      # (tn, C)
        selected = jnp.sum(
            jnp.where(col == labels, x, jnp.zeros_like(x)),    # single vsel per element
            axis=-1, keepdims=True,
        ).astype(jnp.float32)                                  # (tn, 1) f32

        # exp / logsumexp path in f32 (accumulate in f32).
        p = jnp.exp((x - m).astype(jnp.float32))               # (tn, C) f32
        lse = jnp.log(jnp.sum(p, axis=-1, keepdims=True)) + m.astype(jnp.float32)
        nll = lse - selected                                   # (tn, 1) f32

        # Row-validity mask for the ragged last tile: padded rows may hold garbage (even NaN),
        # the select discards them before they can reach the reduction.
        row = lax.broadcasted_iota(jnp.int32, (tn, 1), 0)
        valid = (pl.program_id(0) * tn + row) < n
        partial = jnp.sum(jnp.where(valid, nll, 0.0))          # scalar f32

        # Lane-dense, unmasked (1, 8, 128) store; wrapper reads [:, 0, 0].
        psum_ref[...] = jnp.broadcast_to(partial, psum_ref.shape).astype(jnp.float32)

    return kernel


def _choose_tile_rows(n, c, itemsize):
    """Batch-tile rows: dtype-aware ~4 MiB blocks, multiple of 8, >= 2 tiles when possible."""
    target_bytes = 4 * 1024 * 1024
    bytes_per_row = max(c * itemsize, 1)
    tn = max(1, target_bytes // bytes_per_row)
    tn = min(tn, 16384)                                        # keep iota/labels blocks sane
    tn = max(8, (tn // 8) * 8)
    # Guarantee >= 2 grid steps for batches that would otherwise fit in one tile,
    # so dimension_semantics=("parallel",) can shard across v7x's two TensorCores.
    two_step_cap = ((pl.cdiv(n, 2) + 7) // 8) * 8
    tn = min(tn, max(8, two_step_cap))
    # Never exceed the batch; a full-extent block is always legal even if n % 8 != 0.
    if n < 8:
        return max(n, 1)
    return min(tn, n)


def _vmem_limit_bytes():
    """Generation-aware scoped-VMEM limit: ~3/4 of physical capacity, capped at 96 MiB."""
    cap = 128 * 1024 * 1024
    try:
        cap = int(getattr(pltpu.get_tpu_info(), "vmem_capacity_bytes", cap))
    except Exception:
        pass
    return int(min(max(cap * 3 // 4, 32 * 1024 * 1024), 96 * 1024 * 1024))


def combined_loss(y_pred, y_true, alpha=0.5, beta=0.3, gamma=0.2, tile_rows=None):
    """y_pred: (N, C) float logits (f32/bf16); y_true: (N,) integer class indices."""
    n, c = y_pred.shape
    labels = y_true.astype(jnp.int32).reshape(n, 1)

    if tile_rows is None:
        tn = _choose_tile_rows(n, c, jnp.dtype(y_pred.dtype).itemsize)
    else:
        tn = tile_rows
    num_tiles = pl.cdiv(n, tn)

    psums = pl.pallas_call(
        _make_nll_partial_kernel(n, tn),
        out_shape=jax.ShapeDtypeStruct((num_tiles, 8, 128), jnp.float32),
        grid=(num_tiles,),
        in_specs=[
            pl.BlockSpec((tn, c), lambda i: (i, 0)),           # logits tile (original dtype)
            pl.BlockSpec((tn, 1), lambda i: (i, 0)),           # labels tile (int32, VMEM)
        ],
        out_specs=pl.BlockSpec((1, 8, 128), lambda i: (i, 0, 0)),
        compiler_params=pltpu.CompilerParams(
            dimension_semantics=("parallel",),                 # independent tiles: v7x 2-TC friendly
            vmem_limit_bytes=_vmem_limit_bytes(),
        ),
    )(y_pred, labels)

    # Tiny scalar finalization in the wrapper (keeps the grid axis fully parallel).
    ce = jnp.sum(psums[:, 0, 0]) / n
    pt = jnp.exp(-ce)
    focal = (1.0 - pt) * (1.0 - pt) * ce                       # FocalLoss(alpha=1, gamma=2) on mean CE
    kl = ce                                                    # KLDiv(batchmean, one-hot, log_softmax) == CE
    return alpha * ce + beta * focal + gamma * kl


def combined_loss_ref(y_pred, y_true, alpha=0.5, beta=0.3, gamma=0.2):
    """Pure-JAX reference for sanity checking."""
    logp = jax.nn.log_softmax(y_pred.astype(jnp.float32), axis=1)
    nll = -jnp.take_along_axis(logp, y_true[:, None].astype(jnp.int32), axis=1)[:, 0]
    ce = jnp.mean(nll)
    pt = jnp.exp(-ce)
    focal = (1.0 - pt) ** 2 * ce
    kl = ce
    return alpha * ce + beta * focal + gamma * kl


if __name__ == "__main__":
    key = jax.random.PRNGKey(0)

    # Case 1: batch=8, 32 classes, f32 (single tile).
    k1, k2 = jax.random.split(key)
    N, C = 8, 32
    y_pred = jax.random.normal(k1, (N, C), dtype=jnp.float32)
    y_true = jax.random.randint(k2, (N,), 0, C, dtype=jnp.int32)
    out = jax.block_until_ready(combined_loss(y_pred, y_true, 0.5, 0.3, 0.2))
    ref = combined_loss_ref(y_pred, y_true, 0.5, 0.3, 0.2)
    assert jnp.allclose(out, ref, rtol=1e-5, atol=1e-5), (out, ref)

    # Case 2: batch=16, default tiling -> auto-split into 2 parallel tiles (v7x 2-TC path).
    k3, k4 = jax.random.split(k2)
    y_pred2 = jax.random.normal(k3, (16, C), dtype=jnp.float32)
    y_true2 = jax.random.randint(k4, (16,), 0, C, dtype=jnp.int32)
    out2 = jax.block_until_ready(combined_loss(y_pred2, y_true2, 0.5, 0.3, 0.2))
    ref2 = combined_loss_ref(y_pred2, y_true2, 0.5, 0.3, 0.2)
    assert jnp.allclose(out2, ref2, rtol=1e-5, atol=1e-5), (out2, ref2)

    # Case 3: batch=24, forced 8-row tiles (3 parallel tiles).
    k5, k6 = jax.random.split(k4)
    y_pred3 = jax.random.normal(k5, (24, C), dtype=jnp.float32)
    y_true3 = jax.random.randint(k6, (24,), 0, C, dtype=jnp.int32)
    out3 = jax.block_until_ready(combined_loss(y_pred3, y_true3, 0.5, 0.3, 0.2, tile_rows=8))
    ref3 = combined_loss_ref(y_pred3, y_true3, 0.5, 0.3, 0.2)
    assert jnp.allclose(out3, ref3, rtol=1e-5, atol=1e-5), (out3, ref3)

    # Case 4: ragged batch=20 with 8-row tiles (last tile partially valid, masked in-kernel).
    k7, k8 = jax.random.split(k6)
    y_pred4 = jax.random.normal(k7, (20, C), dtype=jnp.float32)
    y_true4 = jax.random.randint(k8, (20,), 0, C, dtype=jnp.int32)
    out4 = jax.block_until_ready(combined_loss(y_pred4, y_true4, 0.5, 0.3, 0.2, tile_rows=8))
    ref4 = combined_loss_ref(y_pred4, y_true4, 0.5, 0.3, 0.2)
    assert jnp.allclose(out4, ref4, rtol=1e-5, atol=1e-5), (out4, ref4)

    # Case 5: bf16 logits (native-dtype max/select path), compared to f32 reference loosely.
    k9, k10 = jax.random.split(k8)
    y_pred5 = jax.random.normal(k9, (16, 64), dtype=jnp.bfloat16)
    y_true5 = jax.random.randint(k10, (16,), 0, 64, dtype=jnp.int32)
    out5 = jax.block_until_ready(combined_loss(y_pred5, y_true5, 0.5, 0.3, 0.2))
    ref5 = combined_loss_ref(y_pred5, y_true5, 0.5, 0.3, 0.2)
    assert jnp.allclose(out5, ref5, rtol=2e-2, atol=2e-2), (out5, ref5)

    print("KERNEL_OK")
</pallas_src>

<mosaic_0001>
module attributes {stable_mosaic.version = 11 : i64} {
  func.func @kernel(%arg0: i32, %arg1: memref<8x32xf32, #tpu.memory_space<vmem>>, %arg2: memref<8x1xi32, #tpu.memory_space<vmem>>, %arg3: memref<1x8x128xf32, #tpu.memory_space<vmem>>) attributes {dimension_semantics = [#tpu.dimension_semantics<parallel>], iteration_bounds = array<i64: 1>, scalar_prefetch = 0 : i64, scratch_operands = 0 : i64, tpu.core_type = #tpu.core_type<tc>, window_params = [{transform_indices = @transform_0, window_bounds = array<i64: 8, 32>}, {transform_indices = @transform_1, window_bounds = array<i64: 8, 1>}, {transform_indices = @transform_2, window_bounds = array<i64: 1, 8, 128>}]} {
    %c0 = arith.constant 0 : index
    %c0_0 = arith.constant 0 : index
    %0 = vector.load %arg1[%c0, %c0_0] : memref<8x32xf32, #tpu.memory_space<vmem>>, vector<8x32xf32>
    %c0_1 = arith.constant 0 : index
    %c0_2 = arith.constant 0 : index
    %1 = vector.load %arg2[%c0_1, %c0_2] : memref<8x1xi32, #tpu.memory_space<vmem>>, vector<8x1xi32>
    %cst = arith.constant dense<0xFF800000> : vector<8xf32>
    %2 = vector.multi_reduction <maximumf>, %0, %cst [1] : vector<8x32xf32> to vector<8xf32>
    %3 = vector.shape_cast %2 : vector<8xf32> to vector<8x1xf32>
    %4 = tpu.iota {dimensions = array<i32: 1>} : vector<8x32xi32>
    %5 = vector.broadcast %1 : vector<8x1xi32> to vector<8x32xi32>
    %6 = arith.cmpi eq, %4, %5 : vector<8x32xi32>
    %cst_3 = arith.constant 0.000000e+00 : f32
    %7 = vector.broadcast %cst_3 : f32 to vector<8x32xf32>
    %8 = arith.select %6, %0, %7 : vector<8x32xi1>, vector<8x32xf32>
    %cst_4 = arith.constant dense<0.000000e+00> : vector<8xf32>
    %9 = vector.multi_reduction <add>, %8, %cst_4 [1] : vector<8x32xf32> to vector<8xf32>
    %10 = vector.shape_cast %9 : vector<8xf32> to vector<8x1xf32>
    %11 = vector.broadcast %3 : vector<8x1xf32> to vector<8x32xf32>
    %12 = arith.subf %0, %11 : vector<8x32xf32>
    %13 = math.exp %12 : vector<8x32xf32>
    %cst_5 = arith.constant dense<0.000000e+00> : vector<8xf32>
    %14 = vector.multi_reduction <add>, %13, %cst_5 [1] : vector<8x32xf32> to vector<8xf32>
    %15 = vector.shape_cast %14 : vector<8xf32> to vector<8x1xf32>
    %16 = math.log %15 : vector<8x1xf32>
    %17 = arith.addf %16, %3 : vector<8x1xf32>
    %18 = arith.subf %17, %10 : vector<8x1xf32>
    %19 = tpu.iota {dimensions = array<i32: 0>} : vector<8x1xi32>
    %c8_i32 = arith.constant 8 : i32
    %20 = arith.muli %arg0, %c8_i32 : i32
    %21 = vector.broadcast %20 : i32 to vector<8x1xi32>
    %22 = arith.addi %21, %19 : vector<8x1xi32>
    %c8_i32_6 = arith.constant 8 : i32
    %23 = vector.broadcast %c8_i32_6 : i32 to vector<8x1xi32>
    %24 = arith.cmpi slt, %22, %23 : vector<8x1xi32>
    %cst_7 = arith.constant 0.000000e+00 : f32
    %25 = vector.broadcast %cst_7 : f32 to vector<8x1xf32>
    %26 = arith.select %24, %18, %25 : vector<8x1xi1>, vector<8x1xf32>
    %27 = vector.shape_cast %26 : vector<8x1xf32> to vector<1x8x1xf32>
    %cst_8 = arith.constant dense<0.000000e+00> : vector<1xf32>
    %28 = vector.multi_reduction <add>, %27, %cst_8 [1, 2] : vector<1x8x1xf32> to vector<1xf32>
    %29 = vector.shape_cast %28 : vector<1xf32> to vector<1x1x1xf32>
    %30 = vector.extract %29[0, 0, 0] : f32 from vector<1x1x1xf32>
    %31 = vector.broadcast %30 : f32 to vector<1x8x128xf32>
    %c0_9 = arith.constant 0 : index
    %c0_10 = arith.constant 0 : index
    %c0_11 = arith.constant 0 : index
    %32 = vector.load %arg3[%c0_9, %c0_10, %c0_11] : memref<1x8x128xf32, #tpu.memory_space<vmem>>, vector<1x8x128xf32>
    tpu.vector_store %arg3[%c0_9, %c0_10, %c0_11], %31 {strides = array<i32>} : memref<1x8x128xf32, #tpu.memory_space<vmem>>, vector<1x8x128xf32>,
    return
  }
  func.func @transform_0(%arg0: i32) -> (i32, i32) {
    %c0_i32 = arith.constant 0 : i32
    %c0_i32_0 = arith.constant 0 : i32
    return %arg0, %c0_i32 : i32, i32
  }
  func.func @transform_1(%arg0: i32) -> (i32, i32) {
    %c0_i32 = arith.constant 0 : i32
    %c0_i32_0 = arith.constant 0 : i32
    return %arg0, %c0_i32 : i32, i32
  }
  func.func @transform_2(%arg0: i32) -> (i32, i32, i32) {
    %c0_i32 = arith.constant 0 : i32
    %c0_i32_0 = arith.constant 0 : i32
    %c0_i32_1 = arith.constant 0 : i32
    return %arg0, %c0_i32, %c0_i32_0 : i32, i32, i32
  }
}

</mosaic_0001>

<llo_original>
// kernel: tpu_custom_call.1
$region0: #{tpu_custom_call.1}
  #allocation0 [shape = 'u32[]', space=smem, size = 0x4, offset = 0x4, fixed_abs, tag = 'smem constant byte address 0x4 - core index']
  #allocation1 [shape = 'u32[144,128]{1,0:T(1,128)}', space=vmem, size = 0x12000, scoped, tag = 'internal scratch']
  %s0 = inlined_call_operand.hbm [shape: f32[8,32], index: 0, kind: input, shape index: {}]
  %s1 = inlined_call_operand.hbm [shape: s32[8,1], index: 1, kind: input, shape index: {}]
  %s2 = inlined_call_operand.hbm [shape: f32[1,8,128], index: 2, kind: output, shape index: {}]
  %s3 = sld [smem:[#allocation0]]
  $region26: #{tpu_custom_call.1} parent=0
    _
  %s5 = ssub.s32 1, %s3
  %s6 = scalar_select 0, %s5, %s3
  $region1: #{tpu_custom_call.1} parent=0
    #allocation2 [shape = 'u8[4096]{0}', space=vmem, size = 0x1000, scoped, tag = 'input window, operand 0, single buffered']
    #allocation3 [shape = 's32[1]{0}', space=sflag, size = 0x4, scoped, tag = 'scoped memory for tpu_custom_call.1']
    #allocation4 [shape = 's32[1]{0}', space=sflag, size = 0x4, scoped, tag = 'scoped memory for tpu_custom_call.1']
    #allocation5 [shape = 'u8[4096]{0}', space=vmem, size = 0x1000, scoped, tag = 'input window, operand 1, single buffered']
    #allocation6 [shape = 's32[1]{0}', space=sflag, size = 0x4, scoped, tag = 'scoped memory for tpu_custom_call.1']
    #allocation7 [shape = 'u8[4096]{0}', space=vmem, size = 0x1000, scoped, tag = 'output window, operand 0, single buffered']
    %7 = vsyncpa [#allocation3], 0
    %8 = vsyncpa [#allocation6], 0
    %9 = vsyncpa [#allocation4], 0
    // Predicated region
    $region2: #{tpu_custom_call.1} parent=1 // pred_check
      _
    $region3: #{tpu_custom_call.1} parent=1 // pred_check_branch
      %11 = sbr.rel (0) target = $region5
    $region4: #{tpu_custom_call.1} parent=1 // pred_region
      %s13 = ssub.s32 128, 128
      %14 = vsyncadd [#allocation3], %s13
      %s16 = sshll.u32 [#allocation2], 4
      %s17 = int_to_ptr.vmem [resolvable:$true] %s16
      %19 = dma.hbm_to_vmem [thread:$0]  %s0, 128, %s17, [#allocation3]
    $region5: #{tpu_custom_call.1} parent=1 // pred_fallthru
      _
    // Predicated region
    $region6: #{tpu_custom_call.1} parent=1 // pred_check
      _
    $region7: #{tpu_custom_call.1} parent=1 // pred_check_branch
      %21 = sbr.rel (0) target = $region9
    $region8: #{tpu_custom_call.1} parent=1 // pred_region
      %s23 = ssub.s32 128, 128
      %24 = vsyncadd [#allocation6], %s23
      %s26 = sshll.u32 [#allocation5], 4
      %s27 = int_to_ptr.vmem [resolvable:$true] %s26
      %29 = dma.hbm_to_vmem [thread:$0]  %s1, 128, %s27, [#allocation6]
    $region9: #{tpu_custom_call.1} parent=1 // pred_fallthru
      _
    // Predicated region
    $region10: #{tpu_custom_call.1} parent=1 // pred_check
      _
    $region11: #{tpu_custom_call.1} parent=1 // pred_check_branch
      %31 = sbr.rel (0) target = $region13
    $region12: #{tpu_custom_call.1} parent=1 // pred_region
      %32 = dma.done [#allocation3], 128
    $region13: #{tpu_custom_call.1} parent=1 // pred_fallthru
      _
    // Predicated region
    $region14: #{tpu_custom_call.1} parent=1 // pred_check
      _
    $region15: #{tpu_custom_call.1} parent=1 // pred_check_branch
      %34 = sbr.rel (0) target = $region17
    $region16: #{tpu_custom_call.1} parent=1 // pred_region
      %35 = dma.done [#allocation6], 128
    $region17: #{tpu_custom_call.1} parent=1 // pred_fallthru
      _
    %v36 = vld [vmem:[#allocation2] sm:$0xff]
    %v37 = vld [vmem:[#allocation5] sm:$0xff]
    %vm38 = vcmask 261120
    %v39 = vsel %vm38, %v36, -inf
    %40 = vmax.xlane.f32.xlu0 %v39
    %v41 = vpop.xlane.xlu0 %40
    %v42 = vlaneseq
    %v43 = vand.u32 %v42, 127
    %44 = vset.pattern.permute.xlu0 0
    %45 = vperm.xlu0 %44, %v37
    %v46 = vpop.permute.xlu0 %45
    %vm47 = vcmp.eq.s32.totalorder %v43, %v46
    %v48 = vsel %vm47, %v36, 0.0
    %v49 = vsel %vm38, %v48, 0.0
    %50 = vadd.xlane.f32.xlu0 %v49
    %v51 = vpop.xlane.xlu0 %50
    %v52 = vsub.f32 %v36, %v41
    %v53 = vmul.f32 %v52, 1.442695
    %v54 = vpow.pop %v53
    %v55 = vsel %vm38, %v54, 0.0
    %56 = vadd.xlane.f32.xlu0 %v55
    %v57 = vpop.xlane.xlu0 %56
    %v58 = vlog2.pop %v57
    %v59 = vmul.f32 %v58, 0.6931472
    %v60 = vadd.f32 %v59, %v41
    %v61 = vsub.f32 %v60, %v51
    %v62 = vlaneseq
    %v63 = vshrl.u32 %v62, 7
    %s64 = smul.u32 0, 8
    %v65 = vstv %s64
    %v66 = vadd.s32 %v65, %v63
    %vm67 = vcmp.lt.s32.totalorder %v66, 8
    %v68 = vsel %vm67, %v61, 0.0
    %vm69 = vcmask 7168
    %v70 = vsel %vm69, %v68, 0.0
    %71 = vadd.xlane.f32.xlu0 %v70
    %v72 = vpop.xlane.xlu0 %71
    %v73 = vrot.slane %v72, 4
    %v74 = vadd.f32 %v72, %v73
    %v75 = vrot.slane %v74, 2
    %v76 = vadd.f32 %v74, %v75
    %v77 = vrot.slane %v76, 1
    %v78 = vadd.f32 %v76, %v77
    %s79 = vtos %v78
    %v80 = vstv %s79
    %81 = vst [vmem:[#allocation7] sm:$0xff] %v80
    // Predicated region
    $region18: #{tpu_custom_call.1} parent=1 // pred_check
      _
    $region19: #{tpu_custom_call.1} parent=1 // pred_check_branch
      %83 = sbr.rel (0) target = $region21
    $region20: #{tpu_custom_call.1} parent=1 // pred_region
      %s85 = ssub.s32 128, 128
      %86 = vsyncadd [#allocation4], %s85
      %s88 = sshll.u32 [#allocation7], 4
      %s89 = int_to_ptr.vmem [resolvable:$true] %s88
      %91 = dma.vmem_to_hbm [thread:$0]  %s89, 128, %s2, [#allocation4]
    $region21: #{tpu_custom_call.1} parent=1 // pred_fallthru
      _
    // Predicated region
    $region22: #{tpu_custom_call.1} parent=1 // pred_check
      _
    $region23: #{tpu_custom_call.1} parent=1 // pred_check_branch
      %93 = sbr.rel (0) target = $region25
    $region24: #{tpu_custom_call.1} parent=1 // pred_region
      %94 = dma.done [#allocation4], 128
    $region25: #{tpu_custom_call.1} parent=1 // pred_fallthru
      _
    %95 = vsyncpa [#allocation3], 1
    %96 = vsyncpa [#allocation6], 1
    %97 = vsyncpa [#allocation4], 1

</llo_original>
